<compile_context>
chip_gen: v5e
topology: v5e:2x2
jax: 0.10.0
libtpu: 0.0.40
codegen_flags: <defaults>
</compile_context>

<pallas_src>
import functools

import jax
import jax.numpy as jnp
from jax.experimental import pallas as pl
from jax.experimental.pallas import tpu as pltpu


def _round_up(x, m):
    return ((x + m - 1) // m) * m


def _fine_multi_kernel(x_ref, w1_ref, b1_ref, w2_ref, b2_ref, o_ref, *, pooling: str):
    """One (batch-block, scale) grid step: pool tokens, run head, accumulate.

    x_ref : (1, BB, T, D) token block for 'avg'/'max', (1, BB, D) CLS block
            for 'token' (token 0 = CLS).
    w1/b1 : head Linear 1 — W1 pre-scaled by 1/(T-1) for 'avg' pooling.
    w2/b2 : head Linear 2, class dim zero-padded lane-dense and pre-scaled
            by 1/S so the sum over the scale grid axis equals the mean.
    o_ref : (BB, CP) f32 output block, resident across the scale axis.
    """
    si = pl.program_id(1)

    @pl.when(si == 0)
    def _():
        o_ref[...] = jnp.zeros_like(o_ref)

    if pooling == "avg":
        tok = x_ref[0]                                        # (BB, T, D), input dtype
        # mean(tok[:, 1:]) == (sum(all tokens) - CLS) * 1/(T-1); the 1/(T-1)
        # is folded into W1.  f32 accumulation, no full f32 tile copy.
        pooled = (jnp.sum(tok, axis=1, dtype=jnp.float32)
                  - tok[:, 0, :].astype(jnp.float32))         # (BB, D)
    elif pooling == "max":
        tok = x_ref[0]                                        # (BB, T, D)
        # Mask only the CLS row via a tiny (1, T, D) iota; jnp.where
        # broadcasts it over the batch dim (no full-size int32 temporary).
        row = jax.lax.broadcasted_iota(jnp.int32, (1, tok.shape[1], tok.shape[2]), 1)
        neg_inf = jnp.asarray(-jnp.inf, dtype=tok.dtype)
        pooled = jnp.max(jnp.where(row == 0, neg_inf, tok), axis=1).astype(jnp.float32)
    else:  # 'token' — wrapper already sliced the CLS row; block is (1, BB, D).
        pooled = x_ref[0].astype(jnp.float32)                 # (BB, D)

    # Head MLP: Linear -> Dropout(identity, eval) -> ReLU -> Linear.
    # TODO(synk): at production D/H sizes cast pooled/h and W1/W2 to bf16 for
    # the MXU (keep preferred_element_type=f32); kept f32 here so the toy test
    # matches the f32 reference tightly.
    h = jnp.dot(pooled, w1_ref[...], preferred_element_type=jnp.float32)
    h = jnp.maximum(h + b1_ref[...], 0.0)
    y = jnp.dot(h, w2_ref[...], preferred_element_type=jnp.float32) + b2_ref[...]

    # 1/S folded into W2/b2 -> summing over the scale axis gives the mean.
    o_ref[...] += y.astype(o_ref.dtype)


def prepare_fine_multi_params(w1, b1, w2, b2, *, pooling, n_scales, n_tokens=None):
    """One-time (load-time) parameter prep, hoisted out of the forward path.

    * Pads the class dim of W2/b2 to a lane-dense multiple of 128.
    * Folds static scalars: 1/(T-1) into W1 ('avg' pooling), 1/S into W2/b2.
    """
    D, H = w1.shape
    C = w2.shape[1]
    CP = _round_up(C, 128)

    w1 = jnp.asarray(w1)
    if pooling == "avg":
        assert n_tokens is not None and n_tokens > 1, "avg pooling needs n_tokens"
        w1 = w1 * (1.0 / (n_tokens - 1))

    inv_s = 1.0 / n_scales
    w2p = jnp.zeros((H, CP), dtype=w2.dtype).at[:, :C].set(w2 * inv_s)
    b2p = jnp.zeros((1, CP), dtype=b2.dtype).at[0, :C].set(b2 * inv_s)

    return {
        "pooling": pooling,
        "n_scales": n_scales,
        "n_tokens": n_tokens,
        "n_class": C,
        "w1": w1,
        "b1": jnp.asarray(b1).reshape(1, H),
        "w2": w2p,
        "b2": b2p,
    }


def fine_multi_forward(tokens, params):
    """tokens: (S, B, T, D) encoder outputs per scale (any float dtype; bf16
    recommended — the kernel accumulates in f32).  Returns (B, n_class) f32."""
    pooling = params["pooling"]
    w1, b1, w2, b2 = params["w1"], params["b1"], params["w2"], params["b2"]
    C = params["n_class"]

    S, B, T, D = tokens.shape
    H = w1.shape[1]
    CP = w2.shape[1]
    assert S == params["n_scales"]
    if pooling == "avg":
        assert T == params["n_tokens"], "avg pooling: 1/(T-1) was folded for a different T"

    if pooling == "token":
        # Only the CLS row is ever used — slice before the kernel so the
        # per-scale token DMA reads T x less HBM.
        x = tokens[:, :, 0, :]                               # (S, B, D)
    else:
        x = tokens                                           # (S, B, T, D)

    tok_bytes = jnp.dtype(tokens.dtype).itemsize
    row_bytes = (D if pooling == "token" else T * D) * tok_bytes
    row_bytes_f32 = (D if pooling == "token" else T * D) * 4

    # Batch tile: multiple of 8 sublanes, sized so double-buffered token
    # blocks + f32 pooled/output temporaries stay well under scoped VMEM on
    # all generations (v7x: 64 MiB physical / 32 MiB scoped default).
    budget = 12 * 1024 * 1024
    weight_bytes = 4 * (D * H + H + H * CP + CP)
    per_row = 2 * row_bytes + row_bytes_f32 + 2 * CP * 4 + 4 * (D + H + CP)
    avail = max(budget - 2 * weight_bytes, 8 * per_row)
    bb_cap = max(8, min(256, (avail // per_row) // 8 * 8))
    BB = min(bb_cap, _round_up(B, 8))
    BP = _round_up(B, BB)

    if BP != B:
        pad = [(0, 0), (0, BP - B)] + [(0, 0)] * (x.ndim - 2)
        x = jnp.pad(x, pad)

    if pooling == "token":
        x_spec = pl.BlockSpec((1, BB, D), lambda bi, si: (si, bi, 0))
    else:
        x_spec = pl.BlockSpec((1, BB, T, D), lambda bi, si: (si, bi, 0, 0))

    kernel = functools.partial(_fine_multi_kernel, pooling=pooling)

    out = pl.pallas_call(
        kernel,
        out_shape=jax.ShapeDtypeStruct((BP, CP), jnp.float32),
        grid=(BP // BB, S),
        in_specs=[
            x_spec,                                               # token block
            pl.BlockSpec((D, H), lambda bi, si: (0, 0)),          # head W1
            pl.BlockSpec((1, H), lambda bi, si: (0, 0)),          # head b1
            pl.BlockSpec((H, CP), lambda bi, si: (0, 0)),         # head W2 (padded, /S)
            pl.BlockSpec((1, CP), lambda bi, si: (0, 0)),         # head b2 (padded, /S)
        ],
        out_specs=pl.BlockSpec((BB, CP), lambda bi, si: (bi, 0)),
        compiler_params=pltpu.CompilerParams(
            dimension_semantics=("parallel", "arbitrary"),
            vmem_limit_bytes=32 * 1024 * 1024,
        ),
    )(x, w1, b1, w2, b2)

    return out[:B, :C]


def _reference(tokens, w1, b1, w2, b2, pooling="avg"):
    """Plain-JAX reference of the same forward (unscaled, unpadded weights)."""
    outs = []
    for s in range(tokens.shape[0]):
        tok = tokens[s].astype(jnp.float32)
        if pooling == "avg":
            pooled = tok[:, 1:, :].mean(axis=1)
        elif pooling == "max":
            pooled = tok[:, 1:, :].max(axis=1)
        else:
            pooled = tok[:, 0, :]
        h = jnp.maximum(pooled @ w1 + b1, 0.0)
        outs.append(h @ w2 + b2)
    return jnp.stack(outs, axis=0).mean(axis=0)


if __name__ == "__main__":
    # Small shapes consistent with the module's forward:
    #   output_size (D) = 32, inter_dim = [32] (H), n_class = 15 (C),
    #   batch B = 2, N = 16 patch tokens (+1 CLS => T = 17),
    #   scales for this dataset = [1, 2] => S = 2 encoder passes.
    S, B, T, D, H, C = 2, 2, 17, 32, 32, 15

    key = jax.random.PRNGKey(0)
    k_tok, k_w1, k_b1, k_w2, k_b2 = jax.random.split(key, 5)

    tokens_f32 = jax.random.normal(k_tok, (S, B, T, D), dtype=jnp.float32)
    w1 = jax.random.normal(k_w1, (D, H), dtype=jnp.float32) * (1.0 / jnp.sqrt(D))
    b1 = jax.random.normal(k_b1, (H,), dtype=jnp.float32) * 0.01
    w2 = jax.random.normal(k_w2, (H, C), dtype=jnp.float32) * (1.0 / jnp.sqrt(H))
    b2 = jax.random.normal(k_b2, (C,), dtype=jnp.float32) * 0.01

    # Test f32 tokens and (recommended) bf16 tokens; the kernel accumulates
    # pooling in f32 either way, so the reference fed the same tokens matches.
    for tok_dtype, tol in ((jnp.float32, 1e-4), (jnp.bfloat16, 1e-4)):
        tokens = tokens_f32.astype(tok_dtype)
        for pooling in ("avg", "max", "token"):
            params = prepare_fine_multi_params(
                w1, b1, w2, b2, pooling=pooling, n_scales=S, n_tokens=T)
            out = fine_multi_forward(tokens, params)
            out = jax.block_until_ready(out)
            ref = _reference(tokens, w1, b1, w2, b2, pooling=pooling)
            assert out.shape == (B, C)
            assert jnp.allclose(out, ref, rtol=tol, atol=tol), (
                f"mismatch for pooling={pooling}, dtype={tok_dtype}")

    print("KERNEL_OK")
</pallas_src>

<mosaic_0001>
module attributes {stable_mosaic.version = 11 : i64} {
  func.func @_fine_multi_kernel(%arg0: i32, %arg1: i32, %arg2: memref<1x8x17x32xf32, #tpu.memory_space<vmem>>, %arg3: memref<32x32xf32, #tpu.memory_space<vmem>>, %arg4: memref<1x32xf32, #tpu.memory_space<vmem>>, %arg5: memref<32x128xf32, #tpu.memory_space<vmem>>, %arg6: memref<1x128xf32, #tpu.memory_space<vmem>>, %arg7: memref<8x128xf32, #tpu.memory_space<vmem>>) attributes {dimension_semantics = [#tpu.dimension_semantics<parallel>, #tpu.dimension_semantics<arbitrary>], iteration_bounds = array<i64: 1, 2>, scalar_prefetch = 0 : i64, scratch_operands = 0 : i64, tpu.core_type = #tpu.core_type<tc>, window_params = [{transform_indices = @transform_0, window_bounds = array<i64: 1, 8, 17, 32>}, {pipeline_mode = #tpu.pipeline_mode<synchronous>, transform_indices = @transform_1, window_bounds = array<i64: 32, 32>}, {pipeline_mode = #tpu.pipeline_mode<synchronous>, transform_indices = @transform_2, window_bounds = array<i64: 1, 32>}, {pipeline_mode = #tpu.pipeline_mode<synchronous>, transform_indices = @transform_3, window_bounds = array<i64: 32, 128>}, {pipeline_mode = #tpu.pipeline_mode<synchronous>, transform_indices = @transform_4, window_bounds = array<i64: 1, 128>}, {transform_indices = @transform_5, window_bounds = array<i64: 8, 128>}]} {
    %c0_i32 = arith.constant 0 : i32
    %0 = arith.cmpi eq, %arg1, %c0_i32 : i32
    %1 = arith.extui %0 : i1 to i32
    %c0_i32_0 = arith.constant 0 : i32
    %2 = arith.cmpi ne, %1, %c0_i32_0 : i32
    scf.if %2 {
      %cst_19 = arith.constant 0.000000e+00 : f32
      %24 = vector.broadcast %cst_19 : f32 to vector<8x128xf32>
      %c0_20 = arith.constant 0 : index
      %c0_21 = arith.constant 0 : index
      %25 = vector.load %arg7[%c0_20, %c0_21] : memref<8x128xf32, #tpu.memory_space<vmem>>, vector<8x128xf32>
      tpu.vector_store %arg7[%c0_20, %c0_21], %24 {strides = array<i32>} : memref<8x128xf32, #tpu.memory_space<vmem>>, vector<8x128xf32>,
    } else {
    }
    %c0 = arith.constant 0 : index
    %c0_1 = arith.constant 0 : index
    %c0_2 = arith.constant 0 : index
    %c0_3 = arith.constant 0 : index
    %3 = vector.load %arg2[%c0, %c0_1, %c0_2, %c0_3] : memref<1x8x17x32xf32, #tpu.memory_space<vmem>>, vector<1x8x17x32xf32>
    %4 = vector.shape_cast %3 : vector<1x8x17x32xf32> to vector<8x17x32xf32>
    %cst = arith.constant dense<0.000000e+00> : vector<8x32xf32>
    %5 = vector.multi_reduction <add>, %4, %cst [1] : vector<8x17x32xf32> to vector<8x32xf32>
    %6 = vector.extract_strided_slice %4 {offsets = [0, 0, 0], sizes = [8, 1, 32], strides = [1, 1, 1]} : vector<8x17x32xf32> to vector<8x1x32xf32>
    %7 = vector.shape_cast %6 : vector<8x1x32xf32> to vector<8x32xf32>
    %8 = arith.subf %5, %7 : vector<8x32xf32>
    %c0_4 = arith.constant 0 : index
    %c0_5 = arith.constant 0 : index
    %9 = vector.load %arg3[%c0_4, %c0_5] : memref<32x32xf32, #tpu.memory_space<vmem>>, vector<32x32xf32>
    %cst_6 = arith.constant dense<0.000000e+00> : vector<8x32xf32>
    %10 = tpu.matmul %8, %9, %cst_6 {dimension_numbers = #tpu.dot_dimension_numbers<[1], [0], [0], [1], [0, 0, 1, 1], [], []>} : vector<8x32xf32>, vector<32x32xf32>, vector<8x32xf32> -> vector<8x32xf32>
    %c0_7 = arith.constant 0 : index
    %c0_8 = arith.constant 0 : index
    %11 = vector.load %arg4[%c0_7, %c0_8] : memref<1x32xf32, #tpu.memory_space<vmem>>, vector<1x32xf32>
    %12 = vector.broadcast %11 : vector<1x32xf32> to vector<8x32xf32>
    %13 = arith.addf %10, %12 : vector<8x32xf32>
    %cst_9 = arith.constant 0.000000e+00 : f32
    %14 = vector.broadcast %cst_9 : f32 to vector<8x32xf32>
    %15 = arith.maximumf %13, %14 : vector<8x32xf32>
    %c0_10 = arith.constant 0 : index
    %c0_11 = arith.constant 0 : index
    %16 = vector.load %arg5[%c0_10, %c0_11] : memref<32x128xf32, #tpu.memory_space<vmem>>, vector<32x128xf32>
    %cst_12 = arith.constant dense<0.000000e+00> : vector<8x128xf32>
    %17 = tpu.matmul %15, %16, %cst_12 {dimension_numbers = #tpu.dot_dimension_numbers<[1], [0], [0], [1], [0, 0, 1, 1], [], []>} : vector<8x32xf32>, vector<32x128xf32>, vector<8x128xf32> -> vector<8x128xf32>
    %c0_13 = arith.constant 0 : index
    %c0_14 = arith.constant 0 : index
    %18 = vector.load %arg6[%c0_13, %c0_14] : memref<1x128xf32, #tpu.memory_space<vmem>>, vector<1x128xf32>
    %19 = vector.broadcast %18 : vector<1x128xf32> to vector<8x128xf32>
    %20 = arith.addf %17, %19 : vector<8x128xf32>
    %c0_15 = arith.constant 0 : index
    %c0_16 = arith.constant 0 : index
    %21 = vector.load %arg7[%c0_15, %c0_16] : memref<8x128xf32, #tpu.memory_space<vmem>>, vector<8x128xf32>
    %22 = arith.addf %21, %20 : vector<8x128xf32>
    %c0_17 = arith.constant 0 : index
    %c0_18 = arith.constant 0 : index
    %23 = vector.load %arg7[%c0_17, %c0_18] : memref<8x128xf32, #tpu.memory_space<vmem>>, vector<8x128xf32>
    tpu.vector_store %arg7[%c0_17, %c0_18], %22 {strides = array<i32>} : memref<8x128xf32, #tpu.memory_space<vmem>>, vector<8x128xf32>,
    return
  }
  func.func @transform_0(%arg0: i32, %arg1: i32) -> (i32, i32, i32, i32) {
    %c0_i32 = arith.constant 0 : i32
    %c0_i32_0 = arith.constant 0 : i32
    %c0_i32_1 = arith.constant 0 : i32
    return %arg1, %arg0, %c0_i32, %c0_i32_0 : i32, i32, i32, i32
  }
  func.func @transform_1(%arg0: i32, %arg1: i32) -> (i32, i32) {
    %c0_i32 = arith.constant 0 : i32
    %c0_i32_0 = arith.constant 0 : i32
    %c0_i32_1 = arith.constant 0 : i32
    return %c0_i32, %c0_i32_0 : i32, i32
  }
  func.func @transform_2(%arg0: i32, %arg1: i32) -> (i32, i32) {
    %c0_i32 = arith.constant 0 : i32
    %c0_i32_0 = arith.constant 0 : i32
    %c0_i32_1 = arith.constant 0 : i32
    return %c0_i32, %c0_i32_0 : i32, i32
  }
  func.func @transform_3(%arg0: i32, %arg1: i32) -> (i32, i32) {
    %c0_i32 = arith.constant 0 : i32
    %c0_i32_0 = arith.constant 0 : i32
    %c0_i32_1 = arith.constant 0 : i32
    return %c0_i32, %c0_i32_0 : i32, i32
  }
  func.func @transform_4(%arg0: i32, %arg1: i32) -> (i32, i32) {
    %c0_i32 = arith.constant 0 : i32
    %c0_i32_0 = arith.constant 0 : i32
    %c0_i32_1 = arith.constant 0 : i32
    return %c0_i32, %c0_i32_0 : i32, i32
  }
  func.func @transform_5(%arg0: i32, %arg1: i32) -> (i32, i32) {
    %c0_i32 = arith.constant 0 : i32
    %c0_i32_0 = arith.constant 0 : i32
    return %arg0, %c0_i32 : i32, i32
  }
}

</mosaic_0001>

<llo_original>
// kernel: tpu_custom_call.1
$region0: #{tpu_custom_call.1}
  #allocation0 [shape = 'u32[]', space=smem, size = 0x4, offset = 0x4, fixed_abs, tag = 'smem constant byte address 0x4 - core index']
  #allocation1 [shape = 'u32[72,128]{1,0:T(1,128)}', space=vmem, size = 0x9000, scoped, tag = 'internal scratch']
  %s0 = inlined_call_operand.vmem [shape: f32[2,8,17,32], index: 0, kind: input, shape index: {}]
  %s1 = inlined_call_operand.vmem [shape: f32[32,32], index: 1, kind: input, shape index: {}]
  %s2 = inlined_call_operand.vmem [shape: f32[1,32], index: 2, kind: input, shape index: {}]
  %s3 = inlined_call_operand.vmem [shape: f32[32,128], index: 3, kind: input, shape index: {}]
  %s4 = inlined_call_operand.vmem [shape: f32[1,128], index: 4, kind: input, shape index: {}]
  %s5 = inlined_call_operand.hbm [shape: f32[8,128], index: 5, kind: output, shape index: {}]
  %s6 = sld [smem:[#allocation0]]
  $region57: #{tpu_custom_call.1} parent=0
    _
  %s8 = ssub.s32 1, %s6
  %s9 = scalar_select 0, %s8, %s6
  $region1: #{tpu_custom_call.1} parent=0
    #allocation2 [shape = 'u8[4096]{0}', space=vmem, size = 0x1000, scoped, tag = 'output window, operand 0, single buffered']
    #allocation3 [shape = 's32[2]{0}', space=sflag, size = 0x8, scoped, tag = 'scoped memory for tpu_custom_call.1']
    %10 = vsyncpa [#allocation3], 0
    loop: start=0, step=1, limit=4
    $region2: #{tpu_custom_call.1} parent=1 // loop_pre_header
      _
    $region3: #{tpu_custom_call.1} parent=1 // loop_header
      %s12 = sphi 0, %s16
      %p13 = scmp.ge.s32.totalorder %s12, 4
      %s19 = sphi 0, %s31
      %s20 = sphi 0, %s27
      %s21 = sphi 0, %s19
      %s22 = sphi 0, %s20
      %s23 = sphi 0, %s21
      %s24 = sphi 0, %s22
      %s36 = sphi 0, %s38
      %s39 = sphi 0, %s36
      %s40 = sphi 0, %s39
      %s56 = sphi 0, %s40
      %s60 = sphi 0, %s60
      %s62 = sphi 0, %s60
      %s63 = sphi 0, %s62
      %s77 = sphi 0, %s63
      %s81 = sphi 0, %s81
      %s83 = sphi 0, %s81
      %s84 = sphi 0, %s83
      %s98 = sphi 0, %s84
      %s102 = sphi 0, %s102
      %s104 = sphi 0, %s102
      %s105 = sphi 0, %s104
      %s119 = sphi 0, %s105
      %s123 = sphi 0, %s123
      %s125 = sphi 0, %s123
      %s126 = sphi 0, %s125
      %s140 = sphi 0, %s126
      %s146 = sphi 0, %s148
      %s149 = sphi 0, %s146
      %s150 = sphi 0, %s149
      %s166 = sphi 0, %s150
    $region4: #{tpu_custom_call.1} parent=1 // loop_header_branch
      %15 = sbr.rel (%p13) target = $region8
    $region5: #{tpu_custom_call.1} parent=1 // loop_body
      %s17 = ssub.s32 %s12, 1
      %s18 = ssub.s32 %s12, 2
      %s25 = sadd.s32 1, %s20
      %p26 = scmp.ge.s32.totalorder %s25, 2
      %s27 = scalar_select %p26, 0, %s25
      %s28 = sadd.s32 1, %s19
      %s29 = scalar_select %p26, %s28, %s19
      %p30 = scmp.ge.s32.totalorder %s29, 1
      %s31 = scalar_select %p30, 0, %s29
      %s32 = ssub.s32 %s20, %s27
      %s33 = ssub.s32 %s19, %s31
      %s34 = sor.u32 %s32, %s33
      %p35 = scmp.eq.s32.totalorder %s34, 0
      %s37 = sadd.s32 %s36, 1
      %s38 = scalar_select %p35, %s36, %s37
      %p41 = pneg %p35
      %p42 = scmp.eq.s32.totalorder %s12, 1
      %p43 = por %p41, %p42
      %p44 = scmp.ne.s32.totalorder %s36, %s39
      %p45 = scmp.eq.s32.totalorder %s12, 0
      %p46 = por %p44, %p45
      %p47 = scmp.ne.s32.totalorder %s36, %s39
      %p48 = scmp.eq.s32.totalorder %s17, 1
      %p49 = por %p47, %p48
      %p50 = scmp.ne.s32.totalorder %s39, %s40
      %p51 = scmp.eq.s32.totalorder %s17, 0
      %p52 = por %p50, %p51
      %p53 = scmp.ne.s32.totalorder %s39, %s40
      %p54 = scmp.eq.s32.totalorder %s18, 1
      %p55 = por %p53, %p54
      %p57 = scmp.ne.s32.totalorder %s40, %s56
      %p58 = scmp.eq.s32.totalorder %s18, 0
      %p59 = por %p57, %p58
      %s61 = sadd.s32 %s60, 1
      %p64 = scmp.eq.s32.totalorder %s12, 1
      %p65 = scmp.ne.s32.totalorder %s60, %s62
      %p66 = scmp.eq.s32.totalorder %s12, 0
      %p67 = por %p65, %p66
      %p68 = scmp.ne.s32.totalorder %s60, %s62
      %p69 = scmp.eq.s32.totalorder %s17, 1
      %p70 = por %p68, %p69
      %p71 = scmp.ne.s32.totalorder %s62, %s63
      %p72 = scmp.eq.s32.totalorder %s17, 0
      %p73 = por %p71, %p72
      %p74 = scmp.ne.s32.totalorder %s62, %s63
      %p75 = scmp.eq.s32.totalorder %s18, 1
      %p76 = por %p74, %p75
      %p78 = scmp.ne.s32.totalorder %s63, %s77
      %p79 = scmp.eq.s32.totalorder %s18, 0
      %p80 = por %p78, %p79
      %s82 = sadd.s32 %s81, 1
      %p85 = scmp.eq.s32.totalorder %s12, 1
      %p86 = scmp.ne.s32.totalorder %s81, %s83
      %p87 = scmp.eq.s32.totalorder %s12, 0
      %p88 = por %p86, %p87
      %p89 = scmp.ne.s32.totalorder %s81, %s83
      %p90 = scmp.eq.s32.totalorder %s17, 1
      %p91 = por %p89, %p90
      %p92 = scmp.ne.s32.totalorder %s83, %s84
      %p93 = scmp.eq.s32.totalorder %s17, 0
      %p94 = por %p92, %p93
      %p95 = scmp.ne.s32.totalorder %s83, %s84
      %p96 = scmp.eq.s32.totalorder %s18, 1
      %p97 = por %p95, %p96
      %p99 = scmp.ne.s32.totalorder %s84, %s98
      %p100 = scmp.eq.s32.totalorder %s18, 0
      %p101 = por %p99, %p100
      %s103 = sadd.s32 %s102, 1
      %p106 = scmp.eq.s32.totalorder %s12, 1
      %p107 = scmp.ne.s32.totalorder %s102, %s104
      %p108 = scmp.eq.s32.totalorder %s12, 0
      %p109 = por %p107, %p108
      %p110 = scmp.ne.s32.totalorder %s102, %s104
      %p111 = scmp.eq.s32.totalorder %s17, 1
      %p112 = por %p110, %p111
      %p113 = scmp.ne.s32.totalorder %s104, %s105
      %p114 = scmp.eq.s32.totalorder %s17, 0
      %p115 = por %p113, %p114
      %p116 = scmp.ne.s32.totalorder %s104, %s105
      %p117 = scmp.eq.s32.totalorder %s18, 1
      %p118 = por %p116, %p117
      %p120 = scmp.ne.s32.totalorder %s105, %s119
      %p121 = scmp.eq.s32.totalorder %s18, 0
      %p122 = por %p120, %p121
      %s124 = sadd.s32 %s123, 1
      %p127 = scmp.eq.s32.totalorder %s12, 1
      %p128 = scmp.ne.s32.totalorder %s123, %s125
      %p129 = scmp.eq.s32.totalorder %s12, 0
      %p130 = por %p128, %p129
      %p131 = scmp.ne.s32.totalorder %s123, %s125
      %p132 = scmp.eq.s32.totalorder %s17, 1
      %p133 = por %p131, %p132
      %p134 = scmp.ne.s32.totalorder %s125, %s126
      %p135 = scmp.eq.s32.totalorder %s17, 0
      %p136 = por %p134, %p135
      %p137 = scmp.ne.s32.totalorder %s125, %s126
      %p138 = scmp.eq.s32.totalorder %s18, 1
      %p139 = por %p137, %p138
      %p141 = scmp.ne.s32.totalorder %s126, %s140
      %p142 = scmp.eq.s32.totalorder %s18, 0
      %p143 = por %p141, %p142
      %s144 = ssub.s32 %s19, %s31
      %p145 = scmp.eq.s32.totalorder %s144, 0
      %s147 = sadd.s32 %s146, 1
      %s148 = scalar_select %p145, %s146, %s147
      %p151 = pneg %p145
      %p152 = scmp.eq.s32.totalorder %s12, 1
      %p153 = por %p151, %p152
      %p154 = scmp.ne.s32.totalorder %s146, %s149
      %p155 = scmp.eq.s32.totalorder %s12, 0
      %p156 = por %p154, %p155
      %p157 = scmp.ne.s32.totalorder %s146, %s149
      %p158 = scmp.eq.s32.totalorder %s17, 1
      %p159 = por %p157, %p158
      %p160 = scmp.ne.s32.totalorder %s149, %s150
      %p161 = scmp.eq.s32.totalorder %s17, 0
      %p162 = por %p160, %p161
      %p163 = scmp.ne.s32.totalorder %s149, %s150
      %p164 = scmp.eq.s32.totalorder %s18, 1
      %p165 = por %p163, %p164
      %p167 = scmp.ne.s32.totalorder %s150, %s166
      %p168 = scmp.eq.s32.totalorder %s18, 0
      %p169 = por %p167, %p168
      %p170 = scmp.le.s32.totalorder 1, %s12
      %p171 = scmp.lt.s32.totalorder %s12, 3
      %p172 = pnand %p170, %p171
      %p173 = pneg %p172
      // Predicated region
      $region9: #{tpu_custom_call.1} parent=5 // pred_check
        _
      $region10: #{tpu_custom_call.1} parent=5 // pred_check_branch
        %175 = sbr.rel (%p172) target = $region12
      $region11: #{tpu_custom_call.1} parent=5 // pred_region
        %s176 = ssub.s32 %s12, 1
        // Predicated region
        $region13: #{tpu_custom_call.1} parent=11 // pred_check
          %p177 = pneg %p73
        $region14: #{tpu_custom_call.1} parent=11 // pred_check_branch
          %179 = sbr.rel (%p177) target = $region16
        $region15: #{tpu_custom_call.1} parent=11 // pred_region
          _
        $region16: #{tpu_custom_call.1} parent=11 // pred_fallthru
          _
        // Predicated region
        $region17: #{tpu_custom_call.1} parent=11 // pred_check
          %p180 = pneg %p94
        $region18: #{tpu_custom_call.1} parent=11 // pred_check_branch
          %182 = sbr.rel (%p180) target = $region20
        $region19: #{tpu_custom_call.1} parent=11 // pred_region
          _
        $region20: #{tpu_custom_call.1} parent=11 // pred_fallthru
          _
        // Predicated region
        $region21: #{tpu_custom_call.1} parent=11 // pred_check
          %p183 = pneg %p115
        $region22: #{tpu_custom_call.1} parent=11 // pred_check_branch
          %185 = sbr.rel (%p183) target = $region24
        $region23: #{tpu_custom_call.1} parent=11 // pred_region
          _
        $region24: #{tpu_custom_call.1} parent=11 // pred_fallthru
          _
        // Predicated region
        $region25: #{tpu_custom_call.1} parent=11 // pred_check
          %p186 = pneg %p136
        $region26: #{tpu_custom_call.1} parent=11 // pred_check_branch
          %188 = sbr.rel (%p186) target = $region28
        $region27: #{tpu_custom_call.1} parent=11 // pred_region
          _
        $region28: #{tpu_custom_call.1} parent=11 // pred_fallthru
          _
      $region12: #{tpu_custom_call.1} parent=5 // pred_fallthru
        _
      %p189 = scmp.lt.s32.totalorder %s12, 2
      // Predicated region
      $region29: #{tpu_custom_call.1} parent=5 // pred_check
        %p190 = pneg %p189
      $region30: #{tpu_custom_call.1} parent=5 // pred_check_branch
        %192 = sbr.rel (%p190) target = $region32
      $region31: #{tpu_custom_call.1} parent=5 // pred_region
        // Predicated region
        $region33: #{tpu_custom_call.1} parent=31 // pred_check
          %p193 = pneg %p46
        $region34: #{tpu_custom_call.1} parent=31 // pred_check_branch
          %195 = sbr.rel (%p193) target = $region36
        $region35: #{tpu_custom_call.1} parent=31 // pred_region
          %s196 = smul.u32 8, %s19
          %p197 = scmp.lt.s32.totalorder %s20, 1
          %s198 = scalar_select %p197, %s20, 1
          %p199 = scmp.lt.s32.totalorder %s196, 7
          %s200 = scalar_select %p199, %s196, 7
          %s201 = smul.addr %s200, 3
          %s202 = smul.addr %s198, 24
          %s203 = sadd.s32 %s201, %s202
          %s204 = smul.addr %s203, 8
          %s205 = scalar_lea.vmem %s0, %s204
          %s206 = smul.u32 8, %s19
        $region36: #{tpu_custom_call.1} parent=31 // pred_fallthru
          _
      $region32: #{tpu_custom_call.1} parent=5 // pred_fallthru
        _
      %p207 = scmp.le.s32.totalorder 1, %s12
      %p208 = scmp.lt.s32.totalorder %s12, 3
      %p209 = pnand %p207, %p208
      %p210 = pneg %p209
      // Predicated region
      $region37: #{tpu_custom_call.1} parent=5 // pred_check
        _
      $region38: #{tpu_custom_call.1} parent=5 // pred_check_branch
        %212 = sbr.rel (%p209) target = $region40
      $region39: #{tpu_custom_call.1} parent=5 // pred_region
        %s213 = ssub.s32 %s12, 1
        %s214 = smul.u32 8, %s21
        %p215 = scmp.lt.s32.totalorder %s22, 1
        %s216 = scalar_select %p215, %s22, 1
        %p217 = scmp.lt.s32.totalorder %s214, 7
        %s218 = scalar_select %p217, %s214, 7
        %s219 = smul.addr %s218, 3
        %s220 = smul.addr %s216, 24
        %s221 = sadd.s32 %s219, %s220
        %s222 = smul.addr %s221, 8
        %s223 = scalar_lea.vmem %s0, %s222
        %p224 = pneg %p52
        %p225 = pneg %p49
        %p226 = pneg %p73
        %p227 = pneg %p70
        %p228 = pneg %p94
        %p229 = pneg %p91
        %p230 = pneg %p115
        %p231 = pneg %p112
        %p232 = pneg %p136
        %p233 = pneg %p133
        %p234 = pneg %p162
        %p235 = pneg %p159
        %s236 = smul.u32 8, %s21
        %p237 = scmp.lt.s32.totalorder %s22, 1
        %s238 = scalar_select %p237, %s22, 1
        %p239 = scmp.lt.s32.totalorder %s236, 7
        %s240 = scalar_select %p239, %s236, 7
        %s241 = smul.addr %s240, 3
        %s242 = smul.addr %s238, 24
        %s243 = sadd.s32 %s241, %s242
        %s244 = smul.addr %s243, 8
        %s245 = scalar_lea.vmem %s0, %s244
        %s246 = smul.u32 8, %s21
        %p247 = scmp.eq.s32.totalorder %s22, 0
        // Predicated region
        $region41: #{tpu_custom_call.1} parent=39 // pred_check
          %p248 = pneg %p247
        $region42: #{tpu_custom_call.1} parent=39 // pred_check_branch
          %250 = sbr.rel (%p248) target = $region44
        $region43: #{tpu_custom_call.1} parent=39 // pred_region
          %251 = vst [vmem:[#allocation2] sm:$0xff] 0.0
        $region44: #{tpu_custom_call.1} parent=39 // pred_fallthru
          _
        %v252 = vld [vmem:[%s245] sm:$0xff]
        %v253 = vld [vmem:[%s245 + $0x8] sm:$0xff]
        %v254 = vld [vmem:[%s245 + $0x10] sm:$0x1]
        %v255 = vld [vmem:[%s245 + $0x18] sm:$0xff]
        %v256 = vld [vmem:[%s245 + $0x20] sm:$0xff]
        %v257 = vld [vmem:[%s245 + $0x28] sm:$0x1]
        %v258 = vld [vmem:[%s245 + $0x30] sm:$0xff]
        %v259 = vld [vmem:[%s245 + $0x38] sm:$0xff]
        %v260 = vld [vmem:[%s245 + $0x40] sm:$0x1]
        %v261 = vld [vmem:[%s245 + $0x48] sm:$0xff]
        %v262 = vld [vmem:[%s245 + $0x50] sm:$0xff]
        %v263 = vld [vmem:[%s245 + $0x58] sm:$0x1]
        %v264 = vld [vmem:[%s245 + $0x60] sm:$0xff]
        %v265 = vld [vmem:[%s245 + $0x68] sm:$0xff]
        %v266 = vld [vmem:[%s245 + $0x70] sm:$0x1]
        %v267 = vld [vmem:[%s245 + $0x78] sm:$0xff]
        %v268 = vld [vmem:[%s245 + $0x80] sm:$0xff]
        %v269 = vld [vmem:[%s245 + $0x88] sm:$0x1]
        %v270 = vld [vmem:[%s245 + $0x90] sm:$0xff]
        %v271 = vld [vmem:[%s245 + $0x98] sm:$0xff]
        %v272 = vld [vmem:[%s245 + $0xa0] sm:$0x1]
        %v273 = vld [vmem:[%s245 + $0xa8] sm:$0xff]
        %v274 = vld [vmem:[%s245 + $0xb0] sm:$0xff]
        %v275 = vld [vmem:[%s245 + $0xb8] sm:$0x1]
        %vm276 = vcmask 261120
        %v277 = vsel %vm276, %v252, 0.0
        %v278 = vsel %vm276, %v253, 0.0
        %v279 = vadd.f32 %v277, %v278
        %vm280 = vcmask 253952
        %v281 = vsel %vm280, %v254, 0.0
        %v282 = vadd.f32 %v279, %v281
        %v283 = vrot.slane %v282, 4
        %v284 = vadd.f32 %v282, %v283
        %v285 = vrot.slane %v284, 2
        %v286 = vadd.f32 %v284, %v285
        %v287 = vrot.slane %v286, 1
        %v288 = vadd.f32 %v286, %v287
        %v289 = vsel %vm276, %v255, 0.0
        %v290 = vsel %vm276, %v256, 0.0
        %v291 = vadd.f32 %v289, %v290
        %v292 = vsel %vm280, %v257, 0.0
        %v293 = vadd.f32 %v291, %v292
        %v294 = vrot.slane %v293, 4
        %v295 = vadd.f32 %v293, %v294
        %v296 = vrot.slane %v295, 2
        %v297 = vadd.f32 %v295, %v296
        %v298 = vrot.slane %v297, 1
        %v299 = vadd.f32 %v297, %v298
        %v300 = vsel %vm276, %v258, 0.0
        %v301 = vsel %vm276, %v259, 0.0
        %v302 = vadd.f32 %v300, %v301
        %v303 = vsel %vm280, %v260, 0.0
        %v304 = vadd.f32 %v302, %v303
        %v305 = vrot.slane %v304, 4
        %v306 = vadd.f32 %v304, %v305
        %v307 = vrot.slane %v306, 2
        %v308 = vadd.f32 %v306, %v307
        %v309 = vrot.slane %v308, 1
        %v310 = vadd.f32 %v308, %v309
        %v311 = vsel %vm276, %v261, 0.0
        %v312 = vsel %vm276, %v262, 0.0
        %v313 = vadd.f32 %v311, %v312
        %v314 = vsel %vm280, %v263, 0.0
        %v315 = vadd.f32 %v313, %v314
        %v316 = vrot.slane %v315, 4
        %v317 = vadd.f32 %v315, %v316
        %v318 = vrot.slane %v317, 2
        %v319 = vadd.f32 %v317, %v318
        %v320 = vrot.slane %v319, 1
        %v321 = vadd.f32 %v319, %v320
        %v322 = vsel %vm276, %v264, 0.0
        %v323 = vsel %vm276, %v265, 0.0
        %v324 = vadd.f32 %v322, %v323
        %v325 = vsel %vm280, %v266, 0.0
        %v326 = vadd.f32 %v324, %v325
        %v327 = vrot.slane %v326, 4
        %v328 = vadd.f32 %v326, %v327
        %v329 = vrot.slane %v328, 2
        %v330 = vadd.f32 %v328, %v329
        %v331 = vrot.slane %v330, 1
        %v332 = vadd.f32 %v330, %v331
        %v333 = vsel %vm276, %v267, 0.0
        %v334 = vsel %vm276, %v268, 0.0
        %v335 = vadd.f32 %v333, %v334
        %v336 = vsel %vm280, %v269, 0.0
        %v337 = vadd.f32 %v335, %v336
        %v338 = vrot.slane %v337, 4
        %v339 = vadd.f32 %v337, %v338
        %v340 = vrot.slane %v339, 2
        %v341 = vadd.f32 %v339, %v340
        %v342 = vrot.slane %v341, 1
        %v343 = vadd.f32 %v341, %v342
        %v344 = vsel %vm276, %v270, 0.0
        %v345 = vsel %vm276, %v271, 0.0
        %v346 = vadd.f32 %v344, %v345
        %v347 = vsel %vm280, %v272, 0.0
        %v348 = vadd.f32 %v346, %v347
        %v349 = vrot.slane %v348, 4
        %v350 = vadd.f32 %v348, %v349
        %v351 = vrot.slane %v350, 2
        %v352 = vadd.f32 %v350, %v351
        %v353 = vrot.slane %v352, 1
        %v354 = vadd.f32 %v352, %v353
        %v355 = vsel %vm276, %v273, 0.0
        %v356 = vsel %vm276, %v274, 0.0
        %v357 = vadd.f32 %v355, %v356
        %v358 = vsel %vm280, %v275, 0.0
        %v359 = vadd.f32 %v357, %v358
        %v360 = vrot.slane %v359, 4
        %v361 = vadd.f32 %v359, %v360
        %v362 = vrot.slane %v361, 2
        %v363 = vadd.f32 %v361, %v362
        %v364 = vrot.slane %v363, 1
        %v365 = vadd.f32 %v363, %v364
        %v366 = vsub.f32 %v288, %v252
        %v367 = vsub.f32 %v299, %v255
        %v368 = vsub.f32 %v310, %v258
        %v369 = vsub.f32 %v321, %v261
        %v370 = vsub.f32 %v332, %v264
        %v371 = vsub.f32 %v343, %v267
        %v372 = vsub.f32 %v354, %v270
        %v373 = vsub.f32 %v365, %v273
        %v374 = vld [vmem:[%s1] sm:$0xff]
        %v375 = vld [vmem:[%s1 + $0x8] sm:$0xff]
        %v376 = vld [vmem:[%s1 + $0x10] sm:$0xff]
        %v377 = vld [vmem:[%s1 + $0x18] sm:$0xff]
        %v378 = vld [vmem:[%s2] sm:$0x1]
        %v380 = vperm.slane %v378, 0
        %v390 = vrot.slane %v367, 7
        %vm391 = vcmask 1041409
        %v392 = vsel %vm391, %v390, %v366
        %v393 = vrot.slane %v368, 6
        %vm394 = vcmask 1042434
        %v395 = vsel %vm394, %v393, %v392
        %v396 = vrot.slane %v369, 5
        %vm397 = vcmask 1043459
        %v398 = vsel %vm397, %v396, %v395
        %v399 = vrot.slane %v370, 4
        %vm400 = vcmask 1044484
        %v401 = vsel %vm400, %v399, %v398
        %v402 = vrot.slane %v371, 3
        %vm403 = vcmask 1045509
        %v404 = vsel %vm403, %v402, %v401
        %v405 = vrot.slane %v372, 2
        %vm406 = vcmask 1046534
        %v407 = vsel %vm406, %v405, %v404
        %v408 = vrot.slane %v373, 1
        %vm409 = vcmask 1047559
        %v410 = vsel %vm409, %v408, %v407
        %v411 = vsel %vm276, %v410, 0
        %413 = vmatpush.msra.mxu0 0.0
        %414 = vmatpush.msra.mxu0 0.0
        %415 = vmatpush.msra.mxu0 0.0
        %416 = vmatpush.msra.mxu0 0.0
        %417 = vmatpush.msra.mxu0 0.0
        %418 = vmatpush.msra.mxu0 0.0
        %419 = vmatpush.msra.mxu0 0.0
        %420 = vmatpush.msra.mxu0 0.0
        %421 = vmatpush.msra.mxu0 0.0
        %422 = vmatpush.msra.mxu0 0.0
        %423 = vmatpush.msra.mxu0 0.0
        %424 = vmatpush.msra.mxu0 0.0
        %425 = vmatpush.msra.mxu0 %v377
        %426 = vmatpush.msra.mxu0 %v376
        %427 = vmatpush.msra.mxu0 %v375
        %428 = vmatpush.msra.mxu0 %v374
        %429 = vmatmul.f32.gmra.mxu0 %v411
        %v430 = vpop.f32.mrf.mxu0
        %v431 = vadd.f32 %v380, %v430
        %432 = vdwg.mxu0
        %v433 = vmax.f32 %v431, 0.0
        %v434 = vld [vmem:[%s3] sm:$0xff]
        %v435 = vld [vmem:[%s3 + $0x8] sm:$0xff]
        %v436 = vld [vmem:[%s3 + $0x10] sm:$0xff]
        %v437 = vld [vmem:[%s3 + $0x18] sm:$0xff]
        %v438 = vld [vmem:[%s4] sm:$0x1]
        %v440 = vperm.slane %v438, 0
        %v443 = vsel %vm276, %v433, 0
        %445 = vmatpush.msra.mxu0 0.0
        %446 = vmatpush.msra.mxu0 0.0
        %447 = vmatpush.msra.mxu0 0.0
        %448 = vmatpush.msra.mxu0 0.0
        %449 = vmatpush.msra.mxu0 0.0
        %450 = vmatpush.msra.mxu0 0.0
        %451 = vmatpush.msra.mxu0 0.0
        %452 = vmatpush.msra.mxu0 0.0
        %453 = vmatpush.msra.mxu0 0.0
        %454 = vmatpush.msra.mxu0 0.0
        %455 = vmatpush.msra.mxu0 0.0
        %456 = vmatpush.msra.mxu0 0.0
        %457 = vmatpush.msra.mxu0 %v437
        %458 = vmatpush.msra.mxu0 %v436
        %459 = vmatpush.msra.mxu0 %v435
        %460 = vmatpush.msra.mxu0 %v434
        %461 = vmatmul.f32.gmra.mxu0 %v443
        %v462 = vpop.f32.mrf.mxu0
        %v463 = vadd.f32 %v440, %v462
        %464 = vdwg.mxu0
        %v465 = vld [vmem:[#allocation2] sm:$0xff]
        %v466 = vadd.f32 %v465, %v463
        %467 = vst [vmem:[#allocation2] sm:$0xff] %v466
        // Predicated region
        $region45: #{tpu_custom_call.1} parent=39 // pred_check
          %p468 = pneg %p159
        $region46: #{tpu_custom_call.1} parent=39 // pred_check_branch
          %470 = sbr.rel (%p468) target = $region48
        $region47: #{tpu_custom_call.1} parent=39 // pred_region
          %472 = vsyncadd [#allocation3], 0
          %s473 = smul.addr %s21, 8
          %s474 = scalar_lea.hbm %s5, %s473
          %s476 = sshll.u32 [#allocation2], 4
          %s477 = int_to_ptr.vmem [resolvable:$true] %s476
          %s478 = sshll.u32 %s474, 4
          %s479 = int_to_ptr.hbm [resolvable:$true] %s478
          %481 = dma.vmem_to_hbm [thread:$0]  %s477, 128, %s479, [#allocation3]
        $region48: #{tpu_custom_call.1} parent=39 // pred_fallthru
          _
        // Predicated region
        $region49: #{tpu_custom_call.1} parent=39 // pred_check
          %p482 = pneg %p159
        $region50: #{tpu_custom_call.1} parent=39 // pred_check_branch
          %484 = sbr.rel (%p482) target = $region52
        $region51: #{tpu_custom_call.1} parent=39 // pred_region
          %486 = dma.done [#allocation3], 128
        $region52: #{tpu_custom_call.1} parent=39 // pred_fallthru
          _
      $region40: #{tpu_custom_call.1} parent=5 // pred_fallthru
        _
      %p487 = scmp.le.s32.totalorder 2, %s12
      // Predicated region
      $region53: #{tpu_custom_call.1} parent=5 // pred_check
        %p488 = pneg %p487
      $region54: #{tpu_custom_call.1} parent=5 // pred_check_branch
        %490 = sbr.rel (%p488) target = $region56
      $region55: #{tpu_custom_call.1} parent=5 // pred_region
        %s491 = ssub.s32 %s12, 2
      $region56: #{tpu_custom_call.1} parent=5 // pred_fallthru
        _
    $region6: #{tpu_custom_call.1} parent=1 // loop_footer
      %s16 = sadd.s32 1, %s12
    $region7: #{tpu_custom_call.1} parent=1 // loop_footer_branch
      %11 = sbr.rel target = $region3
    $region8: #{tpu_custom_call.1} parent=1 // loop_exit
      _
    %492 = vsyncpa [#allocation3], 1
    %s493 = scalar_lea.sflag [#allocation3], 1
    %494 = vsyncpa %s493, 1

</llo_original>
